<compile_context>
chip_gen: v6e
topology: v6e:2x2x1
jax: 0.10.0
libtpu: 0.0.40
codegen_flags: <defaults>
</compile_context>

<pallas_src>
import jax
import jax.numpy as jnp
from jax.experimental import pallas as pl
from jax.experimental.pallas import tpu as pltpu

EPS = 1e-12          # nn.LayerNorm(hidden_size, eps=1e-12)


def _round_up(n, m):
    return (n + m - 1) // m * m


def _vmem_capacity_bytes():
    try:
        cap = getattr(pltpu.get_tpu_info(), "vmem_capacity_bytes", None)
        if cap:
            return int(cap)
    except Exception:
        pass
    return 64 * 1024 * 1024       # conservative: v7x per-TensorCore VMEM


def _spec(shape, index_map, *, single_buffer=False):
    """BlockSpec; optionally single-buffered (for constant-index resident operands)."""
    if single_buffer:
        for make in (lambda: pl.Buffered(1), lambda: pl.Buffered(buffer_count=1)):
            try:
                return pl.BlockSpec(shape, index_map, pipeline_mode=make())
            except Exception:
                continue
    return pl.BlockSpec(shape, index_map)


def _layernorm_residual(z, x_f32, gamma, beta):
    mean = jnp.mean(z, axis=-1, keepdims=True)
    zc = z - mean
    var = jnp.mean(zc * zc, axis=-1, keepdims=True)
    normed = zc * jax.lax.rsqrt(var + EPS) * gamma + beta
    return x_f32 + normed


# ----------------------------------------------------------------------------
# Kernels
# ----------------------------------------------------------------------------
def _resident_kernel(sub, n_sub):
    """Weight (H,H) VMEM-resident; row tile strip-mined into `n_sub` chunks of `sub` rows."""
    def kernel(x_ref, w_ref, p_ref, o_ref):
        bias = p_ref[0:1, :]
        gamma = p_ref[1:2, :]
        beta = p_ref[2:3, :]

        def body(j, carry):
            r = pl.multiple_of(j * sub, sub)
            xs = x_ref[pl.ds(r, sub), :]                      # load x once per sub-chunk
            z = jnp.dot(xs.astype(w_ref.dtype), w_ref[...],
                        preferred_element_type=jnp.float32) + bias
            # Dropout: inference mode -> identity.
            # TODO(synk): training-mode dropout (pltpu.prng_random_bits mask) not implemented.
            out = _layernorm_residual(z, xs.astype(jnp.float32), gamma, beta)
            o_ref[pl.ds(r, sub), :] = out.astype(o_ref.dtype)
            return carry

        jax.lax.fori_loop(0, n_sub, body, 0, unroll=True)
    return kernel


def _ktiled_kernel(sub, n_sub):
    """Weight streamed over the contraction (hidden) axis as trailing grid dim."""
    def kernel(xk_ref, xfull_ref, w_ref, p_ref, o_ref, acc_ref):
        k = pl.program_id(1)

        @pl.when(k == 0)
        def _():
            acc_ref[...] = jnp.zeros_like(acc_ref)

        acc_ref[...] += jnp.dot(xk_ref[...].astype(w_ref.dtype), w_ref[...],
                                preferred_element_type=jnp.float32)

        @pl.when(k == pl.num_programs(1) - 1)
        def _():
            bias = p_ref[0:1, :]
            gamma = p_ref[1:2, :]
            beta = p_ref[2:3, :]

            def body(j, carry):
                r = pl.multiple_of(j * sub, sub)
                z = acc_ref[pl.ds(r, sub), :] + bias
                xs = xfull_ref[pl.ds(r, sub), :].astype(jnp.float32)
                out = _layernorm_residual(z, xs, gamma, beta)
                o_ref[pl.ds(r, sub), :] = out.astype(o_ref.dtype)
                return carry

            jax.lax.fori_loop(0, n_sub, body, 0, unroll=True)
    return kernel


# ----------------------------------------------------------------------------
# Wrapper
# ----------------------------------------------------------------------------
def residual_block(x, w, b, gamma, beta, *, tm=None, tk=None, force_k_tiling=False):
    """x: [B, S, H].  w: [H, H] input-major (i.e. already W^T), f32 or bf16."""
    B, S, H = x.shape
    rows = B * S
    x2d = x.reshape(rows, H)

    x_item = x.dtype.itemsize
    w_item = w.dtype.itemsize
    w_bytes = H * H * w_item
    params = jnp.stack([b, gamma, beta]).astype(jnp.float32)   # fused (3, H) f32
    params_bytes = 3 * H * 4

    cap = _vmem_capacity_bytes()
    budget = max(32 << 20, int(cap * 0.85))   # ~54 MiB on v7x, ~109 MiB on v5e/v6e

    sub_cap = 256 if H <= 2048 else 128       # row sub-chunk: bounds f32 temporaries
    tm_req = tm

    # ---------------- resident-weight path: row tile selection ---------------
    def resident_vmem(t):
        s = min(t, sub_cap)
        return (w_bytes                              # weight, single-buffered
                + 4 * t * H * x_item                 # x + out tiles, double-buffered
                + params_bytes
                + 6 * s * H * 4)                     # f32 intermediates per sub-chunk

    tm = tm_req if tm_req is not None else max(512, min(4096, (2 << 20) // max(1, H * x_item)))
    tm = min(tm, _round_up(rows, 8))
    tm = (tm // 256) * 256 if tm >= 256 else _round_up(tm, 8)
    # >= 8 grid steps (4 per TensorCore on dual-TC parts) when tiles stay >= 256 rows;
    # harmless on single-TC chips.
    if rows >= 8 * 256:
        tm = min(tm, max(256, _round_up(pl.cdiv(rows, 8), 256)))
    while tm > 256 and resident_vmem(tm) > budget:
        tm -= 256
    while tm > 8 and resident_vmem(tm) > budget:
        tm -= 8

    use_resident = (not force_k_tiling) and resident_vmem(tm) <= budget

    if use_resident:
        sub = min(tm, sub_cap)
        grid = (pl.cdiv(rows, tm),)
        cost = pl.CostEstimate(
            flops=int(2 * rows * H * H + 10 * rows * H),
            transcendentals=int(rows),
            bytes_accessed=int(2 * rows * H * x_item + w_bytes + params_bytes),
        )
        vmem_limit = int(min(cap, max(32 << 20, resident_vmem(tm) + (8 << 20))))

        def build(single_buffer):
            return pl.pallas_call(
                _resident_kernel(sub, tm // sub),
                out_shape=jax.ShapeDtypeStruct((rows, H), x.dtype),
                grid_spec=pltpu.PrefetchScalarGridSpec(
                    num_scalar_prefetch=0,
                    grid=grid,
                    in_specs=[
                        pl.BlockSpec((tm, H), lambda i: (i, 0)),                    # x rows
                        _spec((H, H), lambda i: (0, 0), single_buffer=single_buffer),  # weight
                        _spec((3, H), lambda i: (0, 0), single_buffer=single_buffer),  # b/g/beta
                    ],
                    out_specs=pl.BlockSpec((tm, H), lambda i: (i, 0)),
                ),
                compiler_params=pltpu.CompilerParams(
                    dimension_semantics=("parallel",),
                    vmem_limit_bytes=vmem_limit,
                ),
                cost_estimate=cost,
            )(x2d, w, params)

        try:
            out = build(True)            # single-buffered resident operands
        except Exception:
            out = build(False)           # fall back to default double-buffering
        return out.reshape(B, S, H)

    # ---------------- K-tiled path: weight streamed over contraction axis ----
    if tk is None or H % tk != 0:
        tk = next((c for c in (512, 256, 128) if H % c == 0), H)

    def ktiled_vmem(t):
        s = min(t, sub_cap)
        return (2 * t * tk * x_item       # x (tm, tk) tile, double-buffered
                + 2 * t * H * x_item      # full-row x tile (residual), fetched once per row tile
                + 2 * t * H * x_item      # out tile
                + 2 * tk * H * w_item     # weight K-slab, double-buffered
                + t * H * 4               # f32 accumulator scratch
                + params_bytes
                + 6 * s * H * 4)

    tm = tm_req if tm_req is not None else 512
    tm = min(tm, _round_up(rows, 8))
    tm = (tm // 256) * 256 if tm >= 256 else _round_up(tm, 8)
    while tm > 256 and ktiled_vmem(tm) > budget:
        tm -= 256
    while tm > 8 and ktiled_vmem(tm) > budget:
        tm -= 8

    sub = min(tm, sub_cap)
    nk = H // tk
    grid = (pl.cdiv(rows, tm), nk)
    cost = pl.CostEstimate(
        flops=int(2 * rows * H * H + 10 * rows * H),
        transcendentals=int(rows),
        bytes_accessed=int(3 * rows * H * x_item + grid[0] * w_bytes + params_bytes),
    )
    vmem_limit = int(min(cap, max(32 << 20, ktiled_vmem(tm) + (8 << 20))))

    def build(single_buffer):
        return pl.pallas_call(
            _ktiled_kernel(sub, tm // sub),
            out_shape=jax.ShapeDtypeStruct((rows, H), x.dtype),
            grid_spec=pltpu.PrefetchScalarGridSpec(
                num_scalar_prefetch=0,
                grid=grid,
                in_specs=[
                    pl.BlockSpec((tm, tk), lambda i, k: (i, k)),    # x K-chunk (matmul)
                    pl.BlockSpec((tm, H), lambda i, k: (i, 0)),     # x full row (residual)
                    pl.BlockSpec((tk, H), lambda i, k: (k, 0)),     # weight K-slab
                    _spec((3, H), lambda i, k: (0, 0), single_buffer=single_buffer),
                ],
                out_specs=pl.BlockSpec((tm, H), lambda i, k: (i, 0)),
                scratch_shapes=[pltpu.VMEM((tm, H), jnp.float32)],
            ),
            compiler_params=pltpu.CompilerParams(
                dimension_semantics=("parallel", "arbitrary"),
                vmem_limit_bytes=vmem_limit,
            ),
            cost_estimate=cost,
        )(x2d, x2d, w, params)

    try:
        out = build(True)
    except Exception:
        out = build(False)
    return out.reshape(B, S, H)


def residual_block_ref(x, w, b, gamma, beta):
    z = jnp.einsum("bsh,hk->bsk", x, w.astype(jnp.float32)) + b
    mean = jnp.mean(z, axis=-1, keepdims=True)
    var = jnp.mean((z - mean) ** 2, axis=-1, keepdims=True)
    normed = (z - mean) / jnp.sqrt(var + EPS) * gamma + beta
    return x + normed


if __name__ == "__main__":
    key = jax.random.PRNGKey(0)
    kx, kw, kb, kx2, kw2, kb2 = jax.random.split(key, 6)

    # --- main test: hidden=128, f32 weights, resident-weight path ------------
    B, S, H = 2, 8, 128
    x = jax.random.normal(kx, (B, S, H), dtype=jnp.float32)
    w = jax.random.normal(kw, (H, H), dtype=jnp.float32) * (1.0 / jnp.sqrt(H))
    b = jax.random.normal(kb, (H,), dtype=jnp.float32) * 0.01
    gamma = jnp.ones((H,), dtype=jnp.float32)
    beta = jnp.zeros((H,), dtype=jnp.float32)

    out = jax.block_until_ready(residual_block(x, w, b, gamma, beta))
    ref = residual_block_ref(x, w, b, gamma, beta)
    assert out.shape == (B, S, H)
    assert jnp.allclose(out, ref, atol=1e-4, rtol=1e-4)

    # --- bf16 weight storage (halved weight DMA, native bf16 MXU path) -------
    out_bf16 = jax.block_until_ready(
        residual_block(x, w.astype(jnp.bfloat16), b, gamma, beta))
    assert out_bf16.shape == (B, S, H)
    assert jnp.allclose(out_bf16, ref, atol=5e-2, rtol=5e-2)

    # --- K-tiled path (forced here; used automatically when the (H,H) weight
    #     cannot stay VMEM-resident, e.g. f32 H >= ~3000 on v7x) --------------
    H2 = 256
    x2 = jax.random.normal(kx2, (B, S, H2), dtype=jnp.float32)
    w2 = jax.random.normal(kw2, (H2, H2), dtype=jnp.float32) * (1.0 / jnp.sqrt(H2))
    b2 = jax.random.normal(kb2, (H2,), dtype=jnp.float32) * 0.01
    g2 = jnp.ones((H2,), dtype=jnp.float32)
    be2 = jnp.zeros((H2,), dtype=jnp.float32)
    out_k = jax.block_until_ready(
        residual_block(x2, w2, b2, g2, be2, force_k_tiling=True, tk=128))
    ref_k = residual_block_ref(x2, w2, b2, g2, be2)
    assert out_k.shape == (B, S, H2)
    assert jnp.allclose(out_k, ref_k, atol=1e-4, rtol=1e-4)

    print("KERNEL_OK")
</pallas_src>

<mosaic_0001>
module attributes {stable_mosaic.version = 11 : i64} {
  func.func @kernel(%arg0: i32, %arg1: memref<16x128xf32, #tpu.memory_space<vmem>>, %arg2: memref<128x128xf32, #tpu.memory_space<vmem>>, %arg3: memref<3x128xf32, #tpu.memory_space<vmem>>, %arg4: memref<16x128xf32, #tpu.memory_space<vmem>>) attributes {dimension_semantics = [#tpu.dimension_semantics<parallel>], iteration_bounds = array<i64: 1>, scalar_prefetch = 0 : i64, scratch_operands = 0 : i64, tpu.core_type = #tpu.core_type<tc>, window_params = [{transform_indices = @transform_0, window_bounds = array<i64: 16, 128>}, {pipeline_mode = #tpu.pipeline_mode<synchronous>, transform_indices = @transform_1, window_bounds = array<i64: 128, 128>}, {pipeline_mode = #tpu.pipeline_mode<synchronous>, transform_indices = @transform_2, window_bounds = array<i64: 3, 128>}, {transform_indices = @transform_3, window_bounds = array<i64: 16, 128>}]} {
    %c0 = arith.constant 0 : index
    %c0_0 = arith.constant 0 : index
    %0 = vector.load %arg3[%c0, %c0_0] : memref<3x128xf32, #tpu.memory_space<vmem>>, vector<1x128xf32>
    %c1 = arith.constant 1 : index
    %c0_1 = arith.constant 0 : index
    %1 = vector.load %arg3[%c1, %c0_1] : memref<3x128xf32, #tpu.memory_space<vmem>>, vector<1x128xf32>
    %c2 = arith.constant 2 : index
    %c0_2 = arith.constant 0 : index
    %2 = vector.load %arg3[%c2, %c0_2] : memref<3x128xf32, #tpu.memory_space<vmem>>, vector<1x128xf32>
    %c0_i32 = arith.constant 0 : i32
    %c16_i32 = arith.constant 16 : i32
    %3 = arith.muli %c0_i32, %c16_i32 : i32
    %4 = tpu.assume_multiple %3, 16 : i32
    %5 = arith.index_cast %4 : i32 to index
    %c0_3 = arith.constant 0 : index
    %6 = vector.load %arg1[%5, %c0_3] : memref<16x128xf32, #tpu.memory_space<vmem>>, vector<16x128xf32>
    %c0_4 = arith.constant 0 : index
    %c0_5 = arith.constant 0 : index
    %7 = vector.load %arg2[%c0_4, %c0_5] : memref<128x128xf32, #tpu.memory_space<vmem>>, vector<128x128xf32>
    %cst = arith.constant dense<0.000000e+00> : vector<16x128xf32>
    %8 = tpu.matmul %6, %7, %cst {dimension_numbers = #tpu.dot_dimension_numbers<[1], [0], [0], [1], [0, 0, 1, 1], [], []>} : vector<16x128xf32>, vector<128x128xf32>, vector<16x128xf32> -> vector<16x128xf32>
    %9 = vector.broadcast %0 : vector<1x128xf32> to vector<16x128xf32>
    %10 = arith.addf %8, %9 : vector<16x128xf32>
    %cst_6 = arith.constant dense<0.000000e+00> : vector<16xf32>
    %11 = vector.multi_reduction <add>, %10, %cst_6 [1] : vector<16x128xf32> to vector<16xf32>
    %12 = vector.shape_cast %11 : vector<16xf32> to vector<16x1xf32>
    %cst_7 = arith.constant 1.280000e+02 : f32
    %13 = vector.broadcast %cst_7 : f32 to vector<16x1xf32>
    %14 = arith.divf %12, %13 : vector<16x1xf32>
    %15 = vector.broadcast %14 : vector<16x1xf32> to vector<16x128xf32>
    %16 = arith.subf %10, %15 : vector<16x128xf32>
    %17 = arith.mulf %16, %16 : vector<16x128xf32>
    %cst_8 = arith.constant dense<0.000000e+00> : vector<16xf32>
    %18 = vector.multi_reduction <add>, %17, %cst_8 [1] : vector<16x128xf32> to vector<16xf32>
    %19 = vector.shape_cast %18 : vector<16xf32> to vector<16x1xf32>
    %cst_9 = arith.constant 1.280000e+02 : f32
    %20 = vector.broadcast %cst_9 : f32 to vector<16x1xf32>
    %21 = arith.divf %19, %20 : vector<16x1xf32>
    %cst_10 = arith.constant 9.99999996E-13 : f32
    %22 = vector.broadcast %cst_10 : f32 to vector<16x1xf32>
    %23 = arith.addf %21, %22 : vector<16x1xf32>
    %24 = math.rsqrt %23 : vector<16x1xf32>
    %25 = vector.broadcast %24 : vector<16x1xf32> to vector<16x128xf32>
    %26 = arith.mulf %16, %25 : vector<16x128xf32>
    %27 = vector.broadcast %1 : vector<1x128xf32> to vector<16x128xf32>
    %28 = arith.mulf %26, %27 : vector<16x128xf32>
    %29 = vector.broadcast %2 : vector<1x128xf32> to vector<16x128xf32>
    %30 = arith.addf %28, %29 : vector<16x128xf32>
    %31 = arith.addf %6, %30 : vector<16x128xf32>
    %32 = arith.index_cast %4 : i32 to index
    %c0_11 = arith.constant 0 : index
    %33 = vector.load %arg4[%32, %c0_11] : memref<16x128xf32, #tpu.memory_space<vmem>>, vector<16x128xf32>
    tpu.vector_store %arg4[%32, %c0_11], %31 {strides = array<i32>} : memref<16x128xf32, #tpu.memory_space<vmem>>, vector<16x128xf32>,
    %c1_i32 = arith.constant 1 : i32
    return
  }
  func.func @transform_0(%arg0: i32) -> (i32, i32) {
    %c0_i32 = arith.constant 0 : i32
    %c0_i32_0 = arith.constant 0 : i32
    return %arg0, %c0_i32 : i32, i32
  }
  func.func @transform_1(%arg0: i32) -> (i32, i32) {
    %c0_i32 = arith.constant 0 : i32
    %c0_i32_0 = arith.constant 0 : i32
    %c0_i32_1 = arith.constant 0 : i32
    return %c0_i32, %c0_i32_0 : i32, i32
  }
  func.func @transform_2(%arg0: i32) -> (i32, i32) {
    %c0_i32 = arith.constant 0 : i32
    %c0_i32_0 = arith.constant 0 : i32
    %c0_i32_1 = arith.constant 0 : i32
    return %c0_i32, %c0_i32_0 : i32, i32
  }
  func.func @transform_3(%arg0: i32) -> (i32, i32) {
    %c0_i32 = arith.constant 0 : i32
    %c0_i32_0 = arith.constant 0 : i32
    return %arg0, %c0_i32 : i32, i32
  }
}

module attributes {stable_mosaic.version = 11 : i64} {
  func.func @kernel(%arg0: i32, %arg1: memref<16x128xf32, #tpu.memory_space<vmem>>, %arg2: memref<128x128xf32, #tpu.memory_space<vmem>>, %arg3: memref<3x128xf32, #tpu.memory_space<vmem>>, %arg4: memref<16x128xf32, #tpu.memory_space<vmem>>) attributes {dimension_semantics = [#tpu.dimension_semantics<parallel>], iteration_bounds = array<i64: 1>, scalar_prefetch = 0 : i64, scratch_operands = 0 : i64, tpu.core_type = #tpu.core_type<tc>, window_params = [{transform_indices = @transform_0, window_bounds = array<i64: 16, 128>}, {pipeline_mode = #tpu.pipeline_mode<synchronous>, transform_indices = @transform_1, window_bounds = array<i64: 128, 128>}, {pipeline_mode = #tpu.pipeline_mode<synchronous>, transform_indices = @transform_2, window_bounds = array<i64: 3, 128>}, {transform_indices = @transform_3, window_bounds = array<i64: 16, 128>}]} {
    %c0 = arith.constant 0 : index
    %c0_0 = arith.constant 0 : index
    %0 = vector.load %arg3[%c0, %c0_0] : memref<3x128xf32, #tpu.memory_space<vmem>>, vector<1x128xf32>
    %c1 = arith.constant 1 : index
    %c0_1 = arith.constant 0 : index
    %1 = vector.load %arg3[%c1, %c0_1] : memref<3x128xf32, #tpu.memory_space<vmem>>, vector<1x128xf32>
    %c2 = arith.constant 2 : index
    %c0_2 = arith.constant 0 : index
    %2 = vector.load %arg3[%c2, %c0_2] : memref<3x128xf32, #tpu.memory_space<vmem>>, vector<1x128xf32>
    %c0_i32 = arith.constant 0 : i32
    %c16_i32 = arith.constant 16 : i32
    %3 = arith.muli %c0_i32, %c16_i32 : i32
    %4 = tpu.assume_multiple %3, 16 : i32
    %5 = arith.index_cast %4 : i32 to index
    %c0_3 = arith.constant 0 : index
    %6 = vector.load %arg1[%5, %c0_3] : memref<16x128xf32, #tpu.memory_space<vmem>>, vector<16x128xf32>
    %c0_4 = arith.constant 0 : index
    %c0_5 = arith.constant 0 : index
    %7 = vector.load %arg2[%c0_4, %c0_5] : memref<128x128xf32, #tpu.memory_space<vmem>>, vector<128x128xf32>
    %cst = arith.constant dense<0.000000e+00> : vector<16x128xf32>
    %8 = tpu.matmul %6, %7, %cst {dimension_numbers = #tpu.dot_dimension_numbers<[1], [0], [0], [1], [0, 0, 1, 1], [], []>} : vector<16x128xf32>, vector<128x128xf32>, vector<16x128xf32> -> vector<16x128xf32>
    %9 = vector.broadcast %0 : vector<1x128xf32> to vector<16x128xf32>
    %10 = arith.addf %8, %9 : vector<16x128xf32>
    %cst_6 = arith.constant dense<0.000000e+00> : vector<16xf32>
    %11 = vector.multi_reduction <add>, %10, %cst_6 [1] : vector<16x128xf32> to vector<16xf32>
    %12 = vector.shape_cast %11 : vector<16xf32> to vector<16x1xf32>
    %cst_7 = arith.constant 1.280000e+02 : f32
    %13 = vector.broadcast %cst_7 : f32 to vector<16x1xf32>
    %14 = arith.divf %12, %13 : vector<16x1xf32>
    %15 = vector.broadcast %14 : vector<16x1xf32> to vector<16x128xf32>
    %16 = arith.subf %10, %15 : vector<16x128xf32>
    %17 = arith.mulf %16, %16 : vector<16x128xf32>
    %cst_8 = arith.constant dense<0.000000e+00> : vector<16xf32>
    %18 = vector.multi_reduction <add>, %17, %cst_8 [1] : vector<16x128xf32> to vector<16xf32>
    %19 = vector.shape_cast %18 : vector<16xf32> to vector<16x1xf32>
    %cst_9 = arith.constant 1.280000e+02 : f32
    %20 = vector.broadcast %cst_9 : f32 to vector<16x1xf32>
    %21 = arith.divf %19, %20 : vector<16x1xf32>
    %cst_10 = arith.constant 9.99999996E-13 : f32
    %22 = vector.broadcast %cst_10 : f32 to vector<16x1xf32>
    %23 = arith.addf %21, %22 : vector<16x1xf32>
    %24 = math.rsqrt %23 : vector<16x1xf32>
    %25 = vector.broadcast %24 : vector<16x1xf32> to vector<16x128xf32>
    %26 = arith.mulf %16, %25 : vector<16x128xf32>
    %27 = vector.broadcast %1 : vector<1x128xf32> to vector<16x128xf32>
    %28 = arith.mulf %26, %27 : vector<16x128xf32>
    %29 = vector.broadcast %2 : vector<1x128xf32> to vector<16x128xf32>
    %30 = arith.addf %28, %29 : vector<16x128xf32>
    %31 = arith.addf %6, %30 : vector<16x128xf32>
    %32 = arith.index_cast %4 : i32 to index
    %c0_11 = arith.constant 0 : index
    %33 = vector.load %arg4[%32, %c0_11] : memref<16x128xf32, #tpu.memory_space<vmem>>, vector<16x128xf32>
    tpu.vector_store %arg4[%32, %c0_11], %31 {strides = array<i32>} : memref<16x128xf32, #tpu.memory_space<vmem>>, vector<16x128xf32>,
    %c1_i32 = arith.constant 1 : i32
    return
  }
  func.func @transform_0(%arg0: i32) -> (i32, i32) {
    %c0_i32 = arith.constant 0 : i32
    %c0_i32_0 = arith.constant 0 : i32
    return %arg0, %c0_i32 : i32, i32
  }
  func.func @transform_1(%arg0: i32) -> (i32, i32) {
    %c0_i32 = arith.constant 0 : i32
    %c0_i32_0 = arith.constant 0 : i32
    %c0_i32_1 = arith.constant 0 : i32
    return %c0_i32, %c0_i32_0 : i32, i32
  }
  func.func @transform_2(%arg0: i32) -> (i32, i32) {
    %c0_i32 = arith.constant 0 : i32
    %c0_i32_0 = arith.constant 0 : i32
    %c0_i32_1 = arith.constant 0 : i32
    return %c0_i32, %c0_i32_0 : i32, i32
  }
  func.func @transform_3(%arg0: i32) -> (i32, i32) {
    %c0_i32 = arith.constant 0 : i32
    %c0_i32_0 = arith.constant 0 : i32
    return %arg0, %c0_i32 : i32, i32
  }
}

</mosaic_0001>

<llo_original>
// kernel: tpu_custom_call.1
$region0: #{tpu_custom_call.1}
  #allocation0 [shape = 'u32[]', space=smem, size = 0x4, offset = 0x4, fixed_abs, tag = 'smem constant byte address 0x4 - core index']
  #allocation1 [shape = 'u32[144,128]{1,0:T(1,128)}', space=vmem, size = 0x12000, scoped, tag = 'internal scratch']
  %s0 = inlined_call_operand.hbm [shape: f32[16,128], index: 0, kind: input, shape index: {}]
  %s1 = inlined_call_operand.hbm [shape: f32[128,128], index: 1, kind: input, shape index: {}]
  %s2 = inlined_call_operand.hbm [shape: f32[3,128], index: 2, kind: input, shape index: {}]
  %s3 = inlined_call_operand.hbm [shape: f32[16,128], index: 3, kind: output, shape index: {}]
  %s4 = sld [smem:[#allocation0]]
  $region34: #{tpu_custom_call.1} parent=0
    _
  %s6 = ssub.s32 1, %s4
  %s7 = scalar_select 0, %s6, %s4
  $region1: #{tpu_custom_call.1} parent=0
    #allocation2 [shape = 'u8[8192]{0}', space=vmem, size = 0x2000, scoped, tag = 'input window, operand 0, single buffered']
    #allocation3 [shape = 's32[1]{0}', space=sflag, size = 0x4, scoped, tag = 'scoped memory for tpu_custom_call.1']
    #allocation4 [shape = 's32[1]{0}', space=sflag, size = 0x4, scoped, tag = 'scoped memory for tpu_custom_call.1']
    #allocation5 [shape = 'u8[65536]{0}', space=vmem, size = 0x10000, scoped, tag = 'input window, operand 1, single buffered']
    #allocation6 [shape = 's32[1]{0}', space=sflag, size = 0x4, scoped, tag = 'scoped memory for tpu_custom_call.1']
    #allocation7 [shape = 'u8[2048]{0}', space=vmem, size = 0x800, scoped, tag = 'input window, operand 2, single buffered']
    #allocation8 [shape = 'u8[8192]{0}', space=vmem, size = 0x2000, scoped, tag = 'output window, operand 0, single buffered']
    %8 = vsyncpa [#allocation3], 0
    %9 = vsyncpa [#allocation6], 0
    %10 = vsyncpa [#allocation4], 0
    // Predicated region
    $region2: #{tpu_custom_call.1} parent=1 // pred_check
      _
    $region3: #{tpu_custom_call.1} parent=1 // pred_check_branch
      %12 = sbr.rel (0) target = $region5
    $region4: #{tpu_custom_call.1} parent=1 // pred_region
      %s14 = ssub.s32 256, 256
      %15 = vsyncadd [#allocation3], %s14
      %s16 = sshll.u32 [#allocation2], 4
      %s17 = int_to_ptr.vmem [resolvable:$true] %s16
      %22 = dma.hbm_to_vmem [thread:$0]  %s0, 256, %s17, [#allocation3], 128, 128, 8
    $region5: #{tpu_custom_call.1} parent=1 // pred_fallthru
      _
    // Predicated region
    $region6: #{tpu_custom_call.1} parent=1 // pred_check
      _
    $region7: #{tpu_custom_call.1} parent=1 // pred_check_branch
      %24 = sbr.rel (0) target = $region9
    $region8: #{tpu_custom_call.1} parent=1 // pred_region
      %s26 = ssub.s32 2048, 2048
      %27 = vsyncadd [#allocation6], %s26
      %s28 = sshll.u32 [#allocation5], 4
      %s29 = int_to_ptr.vmem [resolvable:$true] %s28
      %34 = dma.hbm_to_vmem [thread:$0]  %s1, 2048, %s29, [#allocation6], 128, 128, 8
    $region9: #{tpu_custom_call.1} parent=1 // pred_fallthru
      _
    // Predicated region
    $region10: #{tpu_custom_call.1} parent=1 // pred_check
      _
    $region11: #{tpu_custom_call.1} parent=1 // pred_check_branch
      %36 = sbr.rel (0) target = $region13
    $region12: #{tpu_custom_call.1} parent=1 // pred_region
      %s38 = ssub.s32 64, 64
      %39 = vsyncadd [#allocation6], %s38
      %s41 = sshll.u32 [#allocation7], 4
      %s42 = int_to_ptr.vmem [resolvable:$true] %s41
      %44 = dma.hbm_to_vmem [thread:$0]  %s2, 64, %s42, [#allocation6]
    $region13: #{tpu_custom_call.1} parent=1 // pred_fallthru
      _
    // Predicated region
    $region14: #{tpu_custom_call.1} parent=1 // pred_check
      _
    $region15: #{tpu_custom_call.1} parent=1 // pred_check_branch
      %46 = sbr.rel (0) target = $region17
    $region16: #{tpu_custom_call.1} parent=1 // pred_region
      %47 = dma.done [#allocation3], 256
    $region17: #{tpu_custom_call.1} parent=1 // pred_fallthru
      _
    // Predicated region
    $region18: #{tpu_custom_call.1} parent=1 // pred_check
      _
    $region19: #{tpu_custom_call.1} parent=1 // pred_check_branch
      %49 = sbr.rel (0) target = $region21
    $region20: #{tpu_custom_call.1} parent=1 // pred_region
      %50 = dma.done [#allocation6], 2048
    $region21: #{tpu_custom_call.1} parent=1 // pred_fallthru
      _
    // Predicated region
    $region22: #{tpu_custom_call.1} parent=1 // pred_check
      _
    $region23: #{tpu_custom_call.1} parent=1 // pred_check_branch
      %52 = sbr.rel (0) target = $region25
    $region24: #{tpu_custom_call.1} parent=1 // pred_region
      %53 = dma.done [#allocation6], 64
    $region25: #{tpu_custom_call.1} parent=1 // pred_fallthru
      _
    %v54 = vld [vmem:[#allocation7] sm:$0x1]
    %v55 = vld [vmem:[#allocation7 + $0x1] sm:$0x1]
    %v56 = vld [vmem:[#allocation7 + $0x2] sm:$0x1]
    %v57 = vld [vmem:[#allocation2] sm:$0xff]
    %v58 = vld [vmem:[#allocation2 + $0x8] sm:$0xff]
    %v59 = vld [vmem:[#allocation5] sm:$0xff]
    %v60 = vld [vmem:[#allocation5 + $0x8] sm:$0xff]
    %v61 = vld [vmem:[#allocation5 + $0x10] sm:$0xff]
    %v62 = vld [vmem:[#allocation5 + $0x18] sm:$0xff]
    %v63 = vld [vmem:[#allocation5 + $0x20] sm:$0xff]
    %v64 = vld [vmem:[#allocation5 + $0x28] sm:$0xff]
    %v65 = vld [vmem:[#allocation5 + $0x30] sm:$0xff]
    %v66 = vld [vmem:[#allocation5 + $0x38] sm:$0xff]
    %v67 = vld [vmem:[#allocation5 + $0x40] sm:$0xff]
    %v68 = vld [vmem:[#allocation5 + $0x48] sm:$0xff]
    %v69 = vld [vmem:[#allocation5 + $0x50] sm:$0xff]
    %v70 = vld [vmem:[#allocation5 + $0x58] sm:$0xff]
    %v71 = vld [vmem:[#allocation5 + $0x60] sm:$0xff]
    %v72 = vld [vmem:[#allocation5 + $0x68] sm:$0xff]
    %v73 = vld [vmem:[#allocation5 + $0x70] sm:$0xff]
    %v74 = vld [vmem:[#allocation5 + $0x78] sm:$0xff]
    %v75 = vlaneseq
    %v76 = vshrl.u32 %v75, 7
    %v77 = vsub.s32 0, %v76
    %v78 = vrot.slane %v54, %v77
    %79 = vmatprep.subr.mxu0 0.0
    %80 = vmatpush1.msra.mxu0 %v74
    %81 = vmatprep.subr.mxu0 0.0
    %82 = vmatpush1.msra.mxu0 %v73
    %83 = vmatprep.subr.mxu0 0.0
    %84 = vmatpush1.msra.mxu0 %v72
    %85 = vmatprep.subr.mxu0 0.0
    %86 = vmatpush1.msra.mxu0 %v71
    %87 = vmatprep.subr.mxu0 0.0
    %88 = vmatpush1.msra.mxu0 %v70
    %89 = vmatprep.subr.mxu0 0.0
    %90 = vmatpush1.msra.mxu0 %v69
    %91 = vmatprep.subr.mxu0 0.0
    %92 = vmatpush1.msra.mxu0 %v68
    %93 = vmatprep.subr.mxu0 0.0
    %94 = vmatpush1.msra.mxu0 %v67
    %95 = vmatprep.subr.mxu0 0.0
    %96 = vmatpush1.msra.mxu0 %v66
    %97 = vmatprep.subr.mxu0 0.0
    %98 = vmatpush1.msra.mxu0 %v65
    %99 = vmatprep.subr.mxu0 0.0
    %100 = vmatpush1.msra.mxu0 %v64
    %101 = vmatprep.subr.mxu0 0.0
    %102 = vmatpush1.msra.mxu0 %v63
    %103 = vmatprep.subr.mxu0 0.0
    %104 = vmatpush1.msra.mxu0 %v62
    %105 = vmatprep.subr.mxu0 0.0
    %106 = vmatpush1.msra.mxu0 %v61
    %107 = vmatprep.subr.mxu0 0.0
    %108 = vmatpush1.msra.mxu0 %v60
    %109 = vmatprep.subr.mxu0 0.0
    %110 = vmatpush1.msra.mxu0 %v59
    %111 = vmatprep.subr.mxu0 0.0
    %112 = vmatpush2.msra.mxu0 0.0
    %113 = vmatprep.subr.mxu0 0.0
    %114 = vmatpush2.msra.mxu0 0.0
    %115 = vmatprep.subr.mxu0 0.0
    %116 = vmatpush2.msra.mxu0 0.0
    %117 = vmatprep.subr.mxu0 0.0
    %118 = vmatpush2.msra.mxu0 0.0
    %119 = vmatprep.subr.mxu0 0.0
    %120 = vmatpush2.msra.mxu0 0.0
    %121 = vmatprep.subr.mxu0 0.0
    %122 = vmatpush2.msra.mxu0 0.0
    %123 = vmatprep.subr.mxu0 0.0
    %124 = vmatpush2.msra.mxu0 0.0
    %125 = vmatprep.subr.mxu0 0.0
    %126 = vmatpush2.msra.mxu0 0.0
    %127 = vmatprep.subr.mxu0 0.0
    %128 = vmatpush2.msra.mxu0 0.0
    %129 = vmatprep.subr.mxu0 0.0
    %130 = vmatpush2.msra.mxu0 0.0
    %131 = vmatprep.subr.mxu0 0.0
    %132 = vmatpush2.msra.mxu0 0.0
    %133 = vmatprep.subr.mxu0 0.0
    %134 = vmatpush2.msra.mxu0 0.0
    %135 = vmatprep.subr.mxu0 0.0
    %136 = vmatpush2.msra.mxu0 0.0
    %137 = vmatprep.subr.mxu0 0.0
    %138 = vmatpush2.msra.mxu0 0.0
    %139 = vmatprep.subr.mxu0 0.0
    %140 = vmatpush2.msra.mxu0 0.0
    %141 = vmatprep.subr.mxu0 0.0
    %142 = vmatpush2.msra.mxu0 0.0
    %143 = vmatprep.mubr.f32.mxu0 0.0
    %144 = vmatmul.mubr.f32.gmra.mxu0 %v57
    %v145 = vpop.f32.mrf.mxu0
    %v146 = vadd.f32 %v78, %v145
    %v147 = vpop.f32.mrf.mxu0
    %148 = vmatprep.mubr.f32.mxu0 0.0
    %149 = vmatmul.mubr.f32.gmra.mxu0 %v58
    %v150 = vpop.f32.mrf.mxu0
    %v151 = vadd.f32 %v78, %v150
    %v152 = vpop.f32.mrf.mxu0
    %153 = vdwg.mxu0
    %154 = vadd.xlane.f32.xlu0 %v146
    %v155 = vpop.xlane.xlu0 %154
    %156 = vadd.xlane.f32.xlu0 %v151
    %v157 = vpop.xlane.xlu0 %156
    %v158 = vrcp.pop 128.0
    %v159 = vmul.f32 %v155, %v158
    %v160 = vmul.f32 %v157, %v158
    %v161 = vsub.f32 %v146, %v159
    %v162 = vsub.f32 %v151, %v160
    %v163 = vmul.f32 %v161, %v161
    %v164 = vmul.f32 %v162, %v162
    %165 = vadd.xlane.f32.xlu0 %v163
    %v166 = vpop.xlane.xlu0 %165
    %167 = vadd.xlane.f32.xlu0 %v164
    %v168 = vpop.xlane.xlu0 %167
    %v169 = vmul.f32 %v166, %v158
    %v170 = vmul.f32 %v168, %v158
    %v171 = vadd.f32 %v169, 1e-12
    %v172 = vadd.f32 %v170, 1e-12
    %v173 = vrsqrt.pop %v171
    %v174 = vrsqrt.pop %v172
    %v175 = vmul.f32 %v161, %v173
    %v176 = vmul.f32 %v162, %v174
    %v177 = vlaneseq
    %v178 = vshrl.u32 %v177, 7
    %v179 = vsub.s32 0, %v178
    %v180 = vrot.slane %v55, %v179
    %v181 = vmul.f32 %v175, %v180
    %v182 = vmul.f32 %v176, %v180
    %v183 = vlaneseq
    %v184 = vshrl.u32 %v183, 7
    %v185 = vsub.s32 0, %v184
    %v186 = vrot.slane %v56, %v185
    %v187 = vadd.f32 %v181, %v186
    %v188 = vadd.f32 %v182, %v186
    %v189 = vadd.f32 %v57, %v187
    %v190 = vadd.f32 %v58, %v188
    %191 = vst [vmem:[#allocation8] sm:$0xff] %v189
    %192 = vst [vmem:[#allocation8 + $0x8] sm:$0xff] %v190
    // Predicated region
    $region26: #{tpu_custom_call.1} parent=1 // pred_check
      _
    $region27: #{tpu_custom_call.1} parent=1 // pred_check_branch
      %194 = sbr.rel (0) target = $region29
    $region28: #{tpu_custom_call.1} parent=1 // pred_region
      %s196 = ssub.s32 256, 256
      %197 = vsyncadd [#allocation4], %s196
      %s198 = sshll.u32 [#allocation8], 4
      %s199 = int_to_ptr.vmem [resolvable:$true] %s198
      %204 = dma.vmem_to_hbm [thread:$0]  %s199, 256, %s3, [#allocation4], 128, 128, 8
    $region29: #{tpu_custom_call.1} parent=1 // pred_fallthru
      _
    // Predicated region
    $region30: #{tpu_custom_call.1} parent=1 // pred_check
      _
    $region31: #{tpu_custom_call.1} parent=1 // pred_check_branch
      %206 = sbr.rel (0) target = $region33
    $region32: #{tpu_custom_call.1} parent=1 // pred_region
      %207 = dma.done [#allocation4], 256
    $region33: #{tpu_custom_call.1} parent=1 // pred_fallthru
      _
    %208 = vsyncpa [#allocation3], 1
    %209 = vsyncpa [#allocation6], 1
    %210 = vsyncpa [#allocation4], 1

// kernel: tpu_custom_call.1
$region0: #{tpu_custom_call.1}
  #allocation0 [shape = 'u32[]', space=smem, size = 0x4, offset = 0x4, fixed_abs, tag = 'smem constant byte address 0x4 - core index']
  #allocation1 [shape = 'u32[144,128]{1,0:T(1,128)}', space=vmem, size = 0x12000, scoped, tag = 'internal scratch']
  %s0 = inlined_call_operand.hbm [shape: f32[16,128], index: 0, kind: input, shape index: {}]
  %s1 = inlined_call_operand.hbm [shape: f32[128,128], index: 1, kind: input, shape index: {}]
  %s2 = inlined_call_operand.hbm [shape: f32[3,128], index: 2, kind: input, shape index: {}]
  %s3 = inlined_call_operand.hbm [shape: f32[16,128], index: 3, kind: output, shape index: {}]
  %s4 = sld [smem:[#allocation0]]
  $region34: #{tpu_custom_call.1} parent=0
    _
  %s6 = ssub.s32 1, %s4
  %s7 = scalar_select 0, %s6, %s4
  $region1: #{tpu_custom_call.1} parent=0
    #allocation2 [shape = 'u8[8192]{0}', space=vmem, size = 0x2000, scoped, tag = 'input window, operand 0, single buffered']
    #allocation3 [shape = 's32[1]{0}', space=sflag, size = 0x4, scoped, tag = 'scoped memory for tpu_custom_call.1']
    #allocation4 [shape = 's32[1]{0}', space=sflag, size = 0x4, scoped, tag = 'scoped memory for tpu_custom_call.1']
    #allocation5 [shape = 'u8[65536]{0}', space=vmem, size = 0x10000, scoped, tag = 'input window, operand 1, single buffered']
    #allocation6 [shape = 's32[1]{0}', space=sflag, size = 0x4, scoped, tag = 'scoped memory for tpu_custom_call.1']
    #allocation7 [shape = 'u8[2048]{0}', space=vmem, size = 0x800, scoped, tag = 'input window, operand 2, single buffered']
    #allocation8 [shape = 'u8[8192]{0}', space=vmem, size = 0x2000, scoped, tag = 'output window, operand 0, single buffered']
    %8 = vsyncpa [#allocation3], 0
    %9 = vsyncpa [#allocation6], 0
    %10 = vsyncpa [#allocation4], 0
    // Predicated region
    $region2: #{tpu_custom_call.1} parent=1 // pred_check
      _
    $region3: #{tpu_custom_call.1} parent=1 // pred_check_branch
      %12 = sbr.rel (0) target = $region5
    $region4: #{tpu_custom_call.1} parent=1 // pred_region
      %s14 = ssub.s32 256, 256
      %15 = vsyncadd [#allocation3], %s14
      %s16 = sshll.u32 [#allocation2], 4
      %s17 = int_to_ptr.vmem [resolvable:$true] %s16
      %22 = dma.hbm_to_vmem [thread:$0]  %s0, 256, %s17, [#allocation3], 128, 128, 8
    $region5: #{tpu_custom_call.1} parent=1 // pred_fallthru
      _
    // Predicated region
    $region6: #{tpu_custom_call.1} parent=1 // pred_check
      _
    $region7: #{tpu_custom_call.1} parent=1 // pred_check_branch
      %24 = sbr.rel (0) target = $region9
    $region8: #{tpu_custom_call.1} parent=1 // pred_region
      %s26 = ssub.s32 2048, 2048
      %27 = vsyncadd [#allocation6], %s26
      %s28 = sshll.u32 [#allocation5], 4
      %s29 = int_to_ptr.vmem [resolvable:$true] %s28
      %34 = dma.hbm_to_vmem [thread:$0]  %s1, 2048, %s29, [#allocation6], 128, 128, 8
    $region9: #{tpu_custom_call.1} parent=1 // pred_fallthru
      _
    // Predicated region
    $region10: #{tpu_custom_call.1} parent=1 // pred_check
      _
    $region11: #{tpu_custom_call.1} parent=1 // pred_check_branch
      %36 = sbr.rel (0) target = $region13
    $region12: #{tpu_custom_call.1} parent=1 // pred_region
      %s38 = ssub.s32 64, 64
      %39 = vsyncadd [#allocation6], %s38
      %s41 = sshll.u32 [#allocation7], 4
      %s42 = int_to_ptr.vmem [resolvable:$true] %s41
      %44 = dma.hbm_to_vmem [thread:$0]  %s2, 64, %s42, [#allocation6]
    $region13: #{tpu_custom_call.1} parent=1 // pred_fallthru
      _
    // Predicated region
    $region14: #{tpu_custom_call.1} parent=1 // pred_check
      _
    $region15: #{tpu_custom_call.1} parent=1 // pred_check_branch
      %46 = sbr.rel (0) target = $region17
    $region16: #{tpu_custom_call.1} parent=1 // pred_region
      %47 = dma.done [#allocation3], 256
    $region17: #{tpu_custom_call.1} parent=1 // pred_fallthru
      _
    // Predicated region
    $region18: #{tpu_custom_call.1} parent=1 // pred_check
      _
    $region19: #{tpu_custom_call.1} parent=1 // pred_check_branch
      %49 = sbr.rel (0) target = $region21
    $region20: #{tpu_custom_call.1} parent=1 // pred_region
      %50 = dma.done [#allocation6], 2048
    $region21: #{tpu_custom_call.1} parent=1 // pred_fallthru
      _
    // Predicated region
    $region22: #{tpu_custom_call.1} parent=1 // pred_check
      _
    $region23: #{tpu_custom_call.1} parent=1 // pred_check_branch
      %52 = sbr.rel (0) target = $region25
    $region24: #{tpu_custom_call.1} parent=1 // pred_region
      %53 = dma.done [#allocation6], 64
    $region25: #{tpu_custom_call.1} parent=1 // pred_fallthru
      _
    %v54 = vld [vmem:[#allocation7] sm:$0x1]
    %v55 = vld [vmem:[#allocation7 + $0x1] sm:$0x1]
    %v56 = vld [vmem:[#allocation7 + $0x2] sm:$0x1]
    %v57 = vld [vmem:[#allocation2] sm:$0xff]
    %v58 = vld [vmem:[#allocation2 + $0x8] sm:$0xff]
    %v59 = vld [vmem:[#allocation5] sm:$0xff]
    %v60 = vld [vmem:[#allocation5 + $0x8] sm:$0xff]
    %v61 = vld [vmem:[#allocation5 + $0x10] sm:$0xff]
    %v62 = vld [vmem:[#allocation5 + $0x18] sm:$0xff]
    %v63 = vld [vmem:[#allocation5 + $0x20] sm:$0xff]
    %v64 = vld [vmem:[#allocation5 + $0x28] sm:$0xff]
    %v65 = vld [vmem:[#allocation5 + $0x30] sm:$0xff]
    %v66 = vld [vmem:[#allocation5 + $0x38] sm:$0xff]
    %v67 = vld [vmem:[#allocation5 + $0x40] sm:$0xff]
    %v68 = vld [vmem:[#allocation5 + $0x48] sm:$0xff]
    %v69 = vld [vmem:[#allocation5 + $0x50] sm:$0xff]
    %v70 = vld [vmem:[#allocation5 + $0x58] sm:$0xff]
    %v71 = vld [vmem:[#allocation5 + $0x60] sm:$0xff]
    %v72 = vld [vmem:[#allocation5 + $0x68] sm:$0xff]
    %v73 = vld [vmem:[#allocation5 + $0x70] sm:$0xff]
    %v74 = vld [vmem:[#allocation5 + $0x78] sm:$0xff]
    %v75 = vlaneseq
    %v76 = vshrl.u32 %v75, 7
    %v77 = vsub.s32 0, %v76
    %v78 = vrot.slane %v54, %v77
    %79 = vmatprep.subr.mxu0 0.0
    %80 = vmatpush1.msra.mxu0 %v74
    %81 = vmatprep.subr.mxu0 0.0
    %82 = vmatpush1.msra.mxu0 %v73
    %83 = vmatprep.subr.mxu0 0.0
    %84 = vmatpush1.msra.mxu0 %v72
    %85 = vmatprep.subr.mxu0 0.0
    %86 = vmatpush1.msra.mxu0 %v71
    %87 = vmatprep.subr.mxu0 0.0
    %88 = vmatpush1.msra.mxu0 %v70
    %89 = vmatprep.subr.mxu0 0.0
    %90 = vmatpush1.msra.mxu0 %v69
    %91 = vmatprep.subr.mxu0 0.0
    %92 = vmatpush1.msra.mxu0 %v68
    %93 = vmatprep.subr.mxu0 0.0
    %94 = vmatpush1.msra.mxu0 %v67
    %95 = vmatprep.subr.mxu0 0.0
    %96 = vmatpush1.msra.mxu0 %v66
    %97 = vmatprep.subr.mxu0 0.0
    %98 = vmatpush1.msra.mxu0 %v65
    %99 = vmatprep.subr.mxu0 0.0
    %100 = vmatpush1.msra.mxu0 %v64
    %101 = vmatprep.subr.mxu0 0.0
    %102 = vmatpush1.msra.mxu0 %v63
    %103 = vmatprep.subr.mxu0 0.0
    %104 = vmatpush1.msra.mxu0 %v62
    %105 = vmatprep.subr.mxu0 0.0
    %106 = vmatpush1.msra.mxu0 %v61
    %107 = vmatprep.subr.mxu0 0.0
    %108 = vmatpush1.msra.mxu0 %v60
    %109 = vmatprep.subr.mxu0 0.0
    %110 = vmatpush1.msra.mxu0 %v59
    %111 = vmatprep.subr.mxu0 0.0
    %112 = vmatpush2.msra.mxu0 0.0
    %113 = vmatprep.subr.mxu0 0.0
    %114 = vmatpush2.msra.mxu0 0.0
    %115 = vmatprep.subr.mxu0 0.0
    %116 = vmatpush2.msra.mxu0 0.0
    %117 = vmatprep.subr.mxu0 0.0
    %118 = vmatpush2.msra.mxu0 0.0
    %119 = vmatprep.subr.mxu0 0.0
    %120 = vmatpush2.msra.mxu0 0.0
    %121 = vmatprep.subr.mxu0 0.0
    %122 = vmatpush2.msra.mxu0 0.0
    %123 = vmatprep.subr.mxu0 0.0
    %124 = vmatpush2.msra.mxu0 0.0
    %125 = vmatprep.subr.mxu0 0.0
    %126 = vmatpush2.msra.mxu0 0.0
    %127 = vmatprep.subr.mxu0 0.0
    %128 = vmatpush2.msra.mxu0 0.0
    %129 = vmatprep.subr.mxu0 0.0
    %130 = vmatpush2.msra.mxu0 0.0
    %131 = vmatprep.subr.mxu0 0.0
    %132 = vmatpush2.msra.mxu0 0.0
    %133 = vmatprep.subr.mxu0 0.0
    %134 = vmatpush2.msra.mxu0 0.0
    %135 = vmatprep.subr.mxu0 0.0
    %136 = vmatpush2.msra.mxu0 0.0
    %137 = vmatprep.subr.mxu0 0.0
    %138 = vmatpush2.msra.mxu0 0.0
    %139 = vmatprep.subr.mxu0 0.0
    %140 = vmatpush2.msra.mxu0 0.0
    %141 = vmatprep.subr.mxu0 0.0
    %142 = vmatpush2.msra.mxu0 0.0
    %143 = vmatprep.mubr.f32.mxu0 0.0
    %144 = vmatmul.mubr.f32.gmra.mxu0 %v57
    %v145 = vpop.f32.mrf.mxu0
    %v146 = vadd.f32 %v78, %v145
    %v147 = vpop.f32.mrf.mxu0
    %148 = vmatprep.mubr.f32.mxu0 0.0
    %149 = vmatmul.mubr.f32.gmra.mxu0 %v58
    %v150 = vpop.f32.mrf.mxu0
    %v151 = vadd.f32 %v78, %v150
    %v152 = vpop.f32.mrf.mxu0
    %153 = vdwg.mxu0
    %154 = vadd.xlane.f32.xlu0 %v146
    %v155 = vpop.xlane.xlu0 %154
    %156 = vadd.xlane.f32.xlu0 %v151
    %v157 = vpop.xlane.xlu0 %156
    %v158 = vrcp.pop 128.0
    %v159 = vmul.f32 %v155, %v158
    %v160 = vmul.f32 %v157, %v158
    %v161 = vsub.f32 %v146, %v159
    %v162 = vsub.f32 %v151, %v160
    %v163 = vmul.f32 %v161, %v161
    %v164 = vmul.f32 %v162, %v162
    %165 = vadd.xlane.f32.xlu0 %v163
    %v166 = vpop.xlane.xlu0 %165
    %167 = vadd.xlane.f32.xlu0 %v164
    %v168 = vpop.xlane.xlu0 %167
    %v169 = vmul.f32 %v166, %v158
    %v170 = vmul.f32 %v168, %v158
    %v171 = vadd.f32 %v169, 1e-12
    %v172 = vadd.f32 %v170, 1e-12
    %v173 = vrsqrt.pop %v171
    %v174 = vrsqrt.pop %v172
    %v175 = vmul.f32 %v161, %v173
    %v176 = vmul.f32 %v162, %v174
    %v177 = vlaneseq
    %v178 = vshrl.u32 %v177, 7
    %v179 = vsub.s32 0, %v178
    %v180 = vrot.slane %v55, %v179
    %v181 = vmul.f32 %v175, %v180
    %v182 = vmul.f32 %v176, %v180
    %v183 = vlaneseq
    %v184 = vshrl.u32 %v183, 7
    %v185 = vsub.s32 0, %v184
    %v186 = vrot.slane %v56, %v185
    %v187 = vadd.f32 %v181, %v186
    %v188 = vadd.f32 %v182, %v186
    %v189 = vadd.f32 %v57, %v187
    %v190 = vadd.f32 %v58, %v188
    %191 = vst [vmem:[#allocation8] sm:$0xff] %v189
    %192 = vst [vmem:[#allocation8 + $0x8] sm:$0xff] %v190
    // Predicated region
    $region26: #{tpu_custom_call.1} parent=1 // pred_check
      _
    $region27: #{tpu_custom_call.1} parent=1 // pred_check_branch
      %194 = sbr.rel (0) target = $region29
    $region28: #{tpu_custom_call.1} parent=1 // pred_region
      %s196 = ssub.s32 256, 256
      %197 = vsyncadd [#allocation4], %s196
      %s198 = sshll.u32 [#allocation8], 4
      %s199 = int_to_ptr.vmem [resolvable:$true] %s198
      %204 = dma.vmem_to_hbm [thread:$0]  %s199, 256, %s3, [#allocation4], 128, 128, 8
    $region29: #{tpu_custom_call.1} parent=1 // pred_fallthru
      _
    // Predicated region
    $region30: #{tpu_custom_call.1} parent=1 // pred_check
      _
    $region31: #{tpu_custom_call.1} parent=1 // pred_check_branch
      %206 = sbr.rel (0) target = $region33
    $region32: #{tpu_custom_call.1} parent=1 // pred_region
      %207 = dma.done [#allocation4], 256
    $region33: #{tpu_custom_call.1} parent=1 // pred_fallthru
      _
    %208 = vsyncpa [#allocation3], 1
    %209 = vsyncpa [#allocation6], 1
    %210 = vsyncpa [#allocation4], 1

</llo_original>
